<compile_context>
chip_gen: v6e
topology: v6e:2x2x1
jax: 0.10.0
libtpu: 0.0.40
codegen_flags: <defaults>
</compile_context>

<pallas_src>
import functools

import jax
import jax.numpy as jnp
from jax.experimental import pallas as pl
from jax.experimental.pallas import tpu as pltpu


def ddqn_kernel(x_ref, w1_ref, b1_ref, w2_ref, b2_ref, w3_ref, b3_ref, out_ref):
    # One lane-dense batch tile per grid step; whole MLP fits in a few vregs.
    x = x_ref[...]                                               # (4, TB) f32

    # Layer 1: (8,4) @ (4,TB) -> (8,TB); bias (8,1) broadcasts over lanes; ReLU.
    h1 = jnp.dot(w1_ref[...], x, preferred_element_type=jnp.float32) + b1_ref[...]
    h1 = jnp.maximum(h1, 0.0)

    # Layer 2: (8,8) @ (8,TB) -> (8,TB); ReLU.
    h2 = jnp.dot(w2_ref[...], h1, preferred_element_type=jnp.float32) + b2_ref[...]
    h2 = jnp.maximum(h2, 0.0)

    # Layer 3: (4,8) @ (8,TB) -> (4,TB); Tanh (EUP, separate issue slot).
    h3 = jnp.dot(w3_ref[...], h2, preferred_element_type=jnp.float32) + b3_ref[...]
    out_ref[...] = jnp.tanh(h3).astype(out_ref.dtype)


def _round_up(n, m):
    return ((n + m - 1) // m) * m


@functools.partial(jax.jit, static_argnames=("tile_b",))
def ddqn_forward(x, params, tile_b=512):
    """x: (B, 4) float32 batch of states; params: dict of w1,b1,w2,b2,w3,b3.

    Returns (B, 4) float32, matching PyTorch DDQN.forward.
    """
    B = x.shape[0]
    # Lane-dim tile must be a multiple of 128; don't over-pad small batches.
    # A 4x512 f32 tile is ~8 KiB, so double-buffered x/out streams fit easily
    # within v7x's smaller (64 MiB physical / 32 MiB scoped) VMEM budget.
    tb = min(int(tile_b), _round_up(B, 128))
    Bp = _round_up(B, tb)

    # Transpose to lane-dense (F, B) and pad the batch to a tile multiple.
    xT = jnp.pad(x.T, ((0, 0), (0, Bp - B)))                     # (4, Bp)

    w1, b1 = params["w1"], params["b1"]                          # (8,4), (8,1)
    w2, b2 = params["w2"], params["b2"]                          # (8,8), (8,1)
    w3, b3 = params["w3"], params["b3"]                          # (4,8), (4,1)

    def batch_map(i):        # x / out blocks stream over batch tiles
        return (0, i)

    def const_map(i):        # weights & biases stay resident across the grid
        return (0, 0)

    outT = pl.pallas_call(
        ddqn_kernel,
        out_shape=jax.ShapeDtypeStruct((4, Bp), jnp.float32),
        grid=(Bp // tb,),
        in_specs=[
            pl.BlockSpec((4, tb), batch_map),                    # x tile
            pl.BlockSpec(w1.shape, const_map),
            pl.BlockSpec(b1.shape, const_map),
            pl.BlockSpec(w2.shape, const_map),
            pl.BlockSpec(b2.shape, const_map),
            pl.BlockSpec(w3.shape, const_map),
            pl.BlockSpec(b3.shape, const_map),
        ],
        out_specs=pl.BlockSpec((4, tb), batch_map),
        compiler_params=pltpu.CompilerParams(
            # Batch tiles are independent -> shard across both TCs on v7x;
            # harmless no-op on single-TC v5e/v6e.
            dimension_semantics=("parallel",),
        ),
    )(xT, w1, b1, w2, b2, w3, b3)

    return outT[:, :B].T                                         # back to (B, 4)


def init_params(key):
    """Deterministic init mimicking nn.Linear's uniform(-1/sqrt(fan_in), 1/sqrt(fan_in)).

    Weights use the PyTorch (out_features, in_features) layout; biases are
    (out_features, 1) so they broadcast over the lane (batch) axis in-kernel.
    """
    def linear(key, fan_in, fan_out):
        kw, kb = jax.random.split(key)
        bound = 1.0 / jnp.sqrt(jnp.float32(fan_in))
        w = jax.random.uniform(kw, (fan_out, fan_in), jnp.float32, -bound, bound)
        b = jax.random.uniform(kb, (fan_out, 1), jnp.float32, -bound, bound)
        return w, b

    k1, k2, k3 = jax.random.split(key, 3)
    w1, b1 = linear(k1, 4, 8)
    w2, b2 = linear(k2, 8, 8)
    w3, b3 = linear(k3, 8, 4)
    return dict(w1=w1, b1=b1, w2=w2, b2=b2, w3=w3, b3=b3)


if __name__ == "__main__":
    key = jax.random.PRNGKey(0)
    pkey, xkey = jax.random.split(key)

    params = init_params(pkey)
    x = jax.random.normal(xkey, (8, 4), jnp.float32)   # batch of 8 states, state dim 4

    out = ddqn_forward(x, params)
    out = jax.block_until_ready(out)

    # Pure-JAX reference of the same math (PyTorch convention: y = x @ W.T + b).
    ref = x
    ref = jnp.maximum(ref @ params["w1"].T + params["b1"].T, 0.0)
    ref = jnp.maximum(ref @ params["w2"].T + params["b2"].T, 0.0)
    ref = jnp.tanh(ref @ params["w3"].T + params["b3"].T)
    assert out.shape == (8, 4)
    assert jnp.allclose(out, ref, atol=1e-5), "mismatch vs. reference"

    print("KERNEL_OK")
</pallas_src>

<mosaic_0001>
module attributes {stable_mosaic.version = 11 : i64} {
  func.func @ddqn_kernel(%arg0: i32, %arg1: memref<4x128xf32, #tpu.memory_space<vmem>>, %arg2: memref<8x4xf32, #tpu.memory_space<vmem>>, %arg3: memref<8x1xf32, #tpu.memory_space<vmem>>, %arg4: memref<8x8xf32, #tpu.memory_space<vmem>>, %arg5: memref<8x1xf32, #tpu.memory_space<vmem>>, %arg6: memref<4x8xf32, #tpu.memory_space<vmem>>, %arg7: memref<4x1xf32, #tpu.memory_space<vmem>>, %arg8: memref<4x128xf32, #tpu.memory_space<vmem>>) attributes {dimension_semantics = [#tpu.dimension_semantics<parallel>], iteration_bounds = array<i64: 1>, scalar_prefetch = 0 : i64, scratch_operands = 0 : i64, tpu.core_type = #tpu.core_type<tc>, window_params = [{transform_indices = @transform_0, window_bounds = array<i64: 4, 128>}, {pipeline_mode = #tpu.pipeline_mode<synchronous>, transform_indices = @transform_1, window_bounds = array<i64: 8, 4>}, {pipeline_mode = #tpu.pipeline_mode<synchronous>, transform_indices = @transform_2, window_bounds = array<i64: 8, 1>}, {pipeline_mode = #tpu.pipeline_mode<synchronous>, transform_indices = @transform_3, window_bounds = array<i64: 8, 8>}, {pipeline_mode = #tpu.pipeline_mode<synchronous>, transform_indices = @transform_4, window_bounds = array<i64: 8, 1>}, {pipeline_mode = #tpu.pipeline_mode<synchronous>, transform_indices = @transform_5, window_bounds = array<i64: 4, 8>}, {pipeline_mode = #tpu.pipeline_mode<synchronous>, transform_indices = @transform_6, window_bounds = array<i64: 4, 1>}, {transform_indices = @transform_7, window_bounds = array<i64: 4, 128>}]} {
    %c0 = arith.constant 0 : index
    %c0_0 = arith.constant 0 : index
    %0 = vector.load %arg1[%c0, %c0_0] : memref<4x128xf32, #tpu.memory_space<vmem>>, vector<4x128xf32>
    %c0_1 = arith.constant 0 : index
    %c0_2 = arith.constant 0 : index
    %1 = vector.load %arg2[%c0_1, %c0_2] : memref<8x4xf32, #tpu.memory_space<vmem>>, vector<8x4xf32>
    %cst = arith.constant dense<0.000000e+00> : vector<8x128xf32>
    %2 = tpu.matmul %1, %0, %cst {dimension_numbers = #tpu.dot_dimension_numbers<[1], [0], [0], [1], [0, 0, 1, 1], [], []>} : vector<8x4xf32>, vector<4x128xf32>, vector<8x128xf32> -> vector<8x128xf32>
    %c0_3 = arith.constant 0 : index
    %c0_4 = arith.constant 0 : index
    %3 = vector.load %arg3[%c0_3, %c0_4] : memref<8x1xf32, #tpu.memory_space<vmem>>, vector<8x1xf32>
    %4 = vector.broadcast %3 : vector<8x1xf32> to vector<8x128xf32>
    %5 = arith.addf %2, %4 : vector<8x128xf32>
    %cst_5 = arith.constant 0.000000e+00 : f32
    %6 = vector.broadcast %cst_5 : f32 to vector<8x128xf32>
    %7 = arith.maximumf %5, %6 : vector<8x128xf32>
    %c0_6 = arith.constant 0 : index
    %c0_7 = arith.constant 0 : index
    %8 = vector.load %arg4[%c0_6, %c0_7] : memref<8x8xf32, #tpu.memory_space<vmem>>, vector<8x8xf32>
    %cst_8 = arith.constant dense<0.000000e+00> : vector<8x128xf32>
    %9 = tpu.matmul %8, %7, %cst_8 {dimension_numbers = #tpu.dot_dimension_numbers<[1], [0], [0], [1], [0, 0, 1, 1], [], []>} : vector<8x8xf32>, vector<8x128xf32>, vector<8x128xf32> -> vector<8x128xf32>
    %c0_9 = arith.constant 0 : index
    %c0_10 = arith.constant 0 : index
    %10 = vector.load %arg5[%c0_9, %c0_10] : memref<8x1xf32, #tpu.memory_space<vmem>>, vector<8x1xf32>
    %11 = vector.broadcast %10 : vector<8x1xf32> to vector<8x128xf32>
    %12 = arith.addf %9, %11 : vector<8x128xf32>
    %cst_11 = arith.constant 0.000000e+00 : f32
    %13 = vector.broadcast %cst_11 : f32 to vector<8x128xf32>
    %14 = arith.maximumf %12, %13 : vector<8x128xf32>
    %c0_12 = arith.constant 0 : index
    %c0_13 = arith.constant 0 : index
    %15 = vector.load %arg6[%c0_12, %c0_13] : memref<4x8xf32, #tpu.memory_space<vmem>>, vector<4x8xf32>
    %cst_14 = arith.constant dense<0.000000e+00> : vector<4x128xf32>
    %16 = tpu.matmul %15, %14, %cst_14 {dimension_numbers = #tpu.dot_dimension_numbers<[1], [0], [0], [1], [0, 0, 1, 1], [], []>} : vector<4x8xf32>, vector<8x128xf32>, vector<4x128xf32> -> vector<4x128xf32>
    %c0_15 = arith.constant 0 : index
    %c0_16 = arith.constant 0 : index
    %17 = vector.load %arg7[%c0_15, %c0_16] : memref<4x1xf32, #tpu.memory_space<vmem>>, vector<4x1xf32>
    %18 = vector.broadcast %17 : vector<4x1xf32> to vector<4x128xf32>
    %19 = arith.addf %16, %18 : vector<4x128xf32>
    %20 = math.tanh %19 : vector<4x128xf32>
    %c0_17 = arith.constant 0 : index
    %c0_18 = arith.constant 0 : index
    %21 = vector.load %arg8[%c0_17, %c0_18] : memref<4x128xf32, #tpu.memory_space<vmem>>, vector<4x128xf32>
    tpu.vector_store %arg8[%c0_17, %c0_18], %20 {strides = array<i32>} : memref<4x128xf32, #tpu.memory_space<vmem>>, vector<4x128xf32>,
    return
  }
  func.func @transform_0(%arg0: i32) -> (i32, i32) {
    %c0_i32 = arith.constant 0 : i32
    %c0_i32_0 = arith.constant 0 : i32
    return %c0_i32, %arg0 : i32, i32
  }
  func.func @transform_1(%arg0: i32) -> (i32, i32) {
    %c0_i32 = arith.constant 0 : i32
    %c0_i32_0 = arith.constant 0 : i32
    %c0_i32_1 = arith.constant 0 : i32
    return %c0_i32, %c0_i32_0 : i32, i32
  }
  func.func @transform_2(%arg0: i32) -> (i32, i32) {
    %c0_i32 = arith.constant 0 : i32
    %c0_i32_0 = arith.constant 0 : i32
    %c0_i32_1 = arith.constant 0 : i32
    return %c0_i32, %c0_i32_0 : i32, i32
  }
  func.func @transform_3(%arg0: i32) -> (i32, i32) {
    %c0_i32 = arith.constant 0 : i32
    %c0_i32_0 = arith.constant 0 : i32
    %c0_i32_1 = arith.constant 0 : i32
    return %c0_i32, %c0_i32_0 : i32, i32
  }
  func.func @transform_4(%arg0: i32) -> (i32, i32) {
    %c0_i32 = arith.constant 0 : i32
    %c0_i32_0 = arith.constant 0 : i32
    %c0_i32_1 = arith.constant 0 : i32
    return %c0_i32, %c0_i32_0 : i32, i32
  }
  func.func @transform_5(%arg0: i32) -> (i32, i32) {
    %c0_i32 = arith.constant 0 : i32
    %c0_i32_0 = arith.constant 0 : i32
    %c0_i32_1 = arith.constant 0 : i32
    return %c0_i32, %c0_i32_0 : i32, i32
  }
  func.func @transform_6(%arg0: i32) -> (i32, i32) {
    %c0_i32 = arith.constant 0 : i32
    %c0_i32_0 = arith.constant 0 : i32
    %c0_i32_1 = arith.constant 0 : i32
    return %c0_i32, %c0_i32_0 : i32, i32
  }
  func.func @transform_7(%arg0: i32) -> (i32, i32) {
    %c0_i32 = arith.constant 0 : i32
    %c0_i32_0 = arith.constant 0 : i32
    return %c0_i32, %arg0 : i32, i32
  }
}

</mosaic_0001>

<llo_original>
// kernel: ddqn_forward.1
$region0: #{ddqn_forward.1}
  #allocation0 [shape = 'u32[]', space=smem, size = 0x4, offset = 0x4, fixed_abs, tag = 'smem constant byte address 0x4 - core index']
  #allocation1 [shape = 'u32[144,128]{1,0:T(1,128)}', space=vmem, size = 0x12000, scoped, tag = 'internal scratch']
  %s0 = inlined_call_operand.vmem [shape: f32[4,128], index: 0, kind: input, shape index: {}]
  %s1 = inlined_call_operand.vmem [shape: f32[8,4], index: 1, kind: input, shape index: {}]
  %s2 = inlined_call_operand.vmem [shape: f32[8,1], index: 2, kind: input, shape index: {}]
  %s3 = inlined_call_operand.vmem [shape: f32[8,8], index: 3, kind: input, shape index: {}]
  %s4 = inlined_call_operand.vmem [shape: f32[8,1], index: 4, kind: input, shape index: {}]
  %s5 = inlined_call_operand.vmem [shape: f32[4,8], index: 5, kind: input, shape index: {}]
  %s6 = inlined_call_operand.vmem [shape: f32[4,1], index: 6, kind: input, shape index: {}]
  %s7 = inlined_call_operand.vmem [shape: f32[4,128], index: 7, kind: output, shape index: {}]
  %s8 = sld [smem:[#allocation0]]
  $region38: #{ddqn_forward.1} parent=0
    _
  %s10 = ssub.s32 1, %s8
  %s11 = scalar_select 0, %s10, %s8
  // Predicated region
  $region2: #{ddqn_forward.1} parent=0 // pred_check
    _
  $region3: #{ddqn_forward.1} parent=0 // pred_check_branch
    %13 = sbr.rel (0) target = $region5
  $region4: #{ddqn_forward.1} parent=0 // pred_region
    _
  $region5: #{ddqn_forward.1} parent=0 // pred_fallthru
    _
  // Predicated region
  $region6: #{ddqn_forward.1} parent=0 // pred_check
    _
  $region7: #{ddqn_forward.1} parent=0 // pred_check_branch
    %15 = sbr.rel (0) target = $region9
  $region8: #{ddqn_forward.1} parent=0 // pred_region
    _
  $region9: #{ddqn_forward.1} parent=0 // pred_fallthru
    _
  // Predicated region
  $region10: #{ddqn_forward.1} parent=0 // pred_check
    _
  $region11: #{ddqn_forward.1} parent=0 // pred_check_branch
    %17 = sbr.rel (0) target = $region13
  $region12: #{ddqn_forward.1} parent=0 // pred_region
    _
  $region13: #{ddqn_forward.1} parent=0 // pred_fallthru
    _
  // Predicated region
  $region14: #{ddqn_forward.1} parent=0 // pred_check
    _
  $region15: #{ddqn_forward.1} parent=0 // pred_check_branch
    %19 = sbr.rel (0) target = $region17
  $region16: #{ddqn_forward.1} parent=0 // pred_region
    _
  $region17: #{ddqn_forward.1} parent=0 // pred_fallthru
    _
  // Predicated region
  $region18: #{ddqn_forward.1} parent=0 // pred_check
    _
  $region19: #{ddqn_forward.1} parent=0 // pred_check_branch
    %21 = sbr.rel (0) target = $region21
  $region20: #{ddqn_forward.1} parent=0 // pred_region
    _
  $region21: #{ddqn_forward.1} parent=0 // pred_fallthru
    _
  // Predicated region
  $region22: #{ddqn_forward.1} parent=0 // pred_check
    _
  $region23: #{ddqn_forward.1} parent=0 // pred_check_branch
    %23 = sbr.rel (0) target = $region25
  $region24: #{ddqn_forward.1} parent=0 // pred_region
    _
  $region25: #{ddqn_forward.1} parent=0 // pred_fallthru
    _
  // Predicated region
  $region26: #{ddqn_forward.1} parent=0 // pred_check
    _
  $region27: #{ddqn_forward.1} parent=0 // pred_check_branch
    %25 = sbr.rel (0) target = $region29
  $region28: #{ddqn_forward.1} parent=0 // pred_region
    _
  $region29: #{ddqn_forward.1} parent=0 // pred_fallthru
    _
  %v26 = vld [vmem:[%s0] sm:$0xf]
  %v27 = vld [vmem:[%s1] sm:$0xff]
  %v28 = vld [vmem:[%s2] sm:$0xff]
  %30 = vset.pattern.permute.xlu0 0
  %31 = vperm.xlu0 %30, %v28
  %v32 = vpop.permute.xlu0 %31
  %vm34 = vcmask 31744
  %v36 = vsel %vm34, %v27, 0
  %vm38 = vcmask 1043456
  %v40 = vsel %vm38, %v26, 0
  %42 = vmatprep.subr.mxu0 0.0
  %43 = vmatpush1.msra.mxu0 0.0
  %44 = vmatprep.subr.mxu0 0.0
  %45 = vmatpush1.msra.mxu0 0.0
  %46 = vmatprep.subr.mxu0 0.0
  %47 = vmatpush1.msra.mxu0 0.0
  %48 = vmatprep.subr.mxu0 0.0
  %49 = vmatpush1.msra.mxu0 0.0
  %50 = vmatprep.subr.mxu0 0.0
  %51 = vmatpush1.msra.mxu0 0.0
  %52 = vmatprep.subr.mxu0 0.0
  %53 = vmatpush1.msra.mxu0 0.0
  %54 = vmatprep.subr.mxu0 0.0
  %55 = vmatpush1.msra.mxu0 0.0
  %56 = vmatprep.subr.mxu0 0.0
  %57 = vmatpush1.msra.mxu0 0.0
  %58 = vmatprep.subr.mxu0 0.0
  %59 = vmatpush1.msra.mxu0 0.0
  %60 = vmatprep.subr.mxu0 0.0
  %61 = vmatpush1.msra.mxu0 0.0
  %62 = vmatprep.subr.mxu0 0.0
  %63 = vmatpush1.msra.mxu0 0.0
  %64 = vmatprep.subr.mxu0 0.0
  %65 = vmatpush1.msra.mxu0 0.0
  %66 = vmatprep.subr.mxu0 0.0
  %67 = vmatpush1.msra.mxu0 0.0
  %68 = vmatprep.subr.mxu0 0.0
  %69 = vmatpush1.msra.mxu0 0.0
  %70 = vmatprep.subr.mxu0 0.0
  %71 = vmatpush1.msra.mxu0 0.0
  %72 = vmatprep.subr.mxu0 0.0
  %73 = vmatpush1.msra.mxu0 %v40
  %74 = vmatprep.subr.mxu0 0.0
  %75 = vmatpush2.msra.mxu0 0.0
  %76 = vmatprep.subr.mxu0 0.0
  %77 = vmatpush2.msra.mxu0 0.0
  %78 = vmatprep.subr.mxu0 0.0
  %79 = vmatpush2.msra.mxu0 0.0
  %80 = vmatprep.subr.mxu0 0.0
  %81 = vmatpush2.msra.mxu0 0.0
  %82 = vmatprep.subr.mxu0 0.0
  %83 = vmatpush2.msra.mxu0 0.0
  %84 = vmatprep.subr.mxu0 0.0
  %85 = vmatpush2.msra.mxu0 0.0
  %86 = vmatprep.subr.mxu0 0.0
  %87 = vmatpush2.msra.mxu0 0.0
  %88 = vmatprep.subr.mxu0 0.0
  %89 = vmatpush2.msra.mxu0 0.0
  %90 = vmatprep.subr.mxu0 0.0
  %91 = vmatpush2.msra.mxu0 0.0
  %92 = vmatprep.subr.mxu0 0.0
  %93 = vmatpush2.msra.mxu0 0.0
  %94 = vmatprep.subr.mxu0 0.0
  %95 = vmatpush2.msra.mxu0 0.0
  %96 = vmatprep.subr.mxu0 0.0
  %97 = vmatpush2.msra.mxu0 0.0
  %98 = vmatprep.subr.mxu0 0.0
  %99 = vmatpush2.msra.mxu0 0.0
  %100 = vmatprep.subr.mxu0 0.0
  %101 = vmatpush2.msra.mxu0 0.0
  %102 = vmatprep.subr.mxu0 0.0
  %103 = vmatpush2.msra.mxu0 0.0
  %104 = vmatprep.subr.mxu0 0.0
  %105 = vmatpush2.msra.mxu0 0.0
  %106 = vmatprep.mubr.f32.mxu0 0.0
  %107 = vmatmul.mubr.f32.gmra.mxu0 %v36
  %v108 = vpop.f32.mrf.mxu0
  %v109 = vadd.f32 %v32, %v108
  %v110 = vpop.f32.mrf.mxu0
  %111 = vdwg.mxu0
  %v112 = vmax.f32 %v109, 0.0
  %v113 = vld [vmem:[%s3] sm:$0xff]
  %v114 = vld [vmem:[%s4] sm:$0xff]
  %116 = vset.pattern.permute.xlu0 0
  %117 = vperm.xlu0 %116, %v114
  %v118 = vpop.permute.xlu0 %117
  %vm120 = vcmask 64512
  %v122 = vsel %vm120, %v113, 0
  %124 = vmatprep.subr.mxu0 0.0
  %125 = vmatpush1.msra.mxu0 0.0
  %126 = vmatprep.subr.mxu0 0.0
  %127 = vmatpush1.msra.mxu0 0.0
  %128 = vmatprep.subr.mxu0 0.0
  %129 = vmatpush1.msra.mxu0 0.0
  %130 = vmatprep.subr.mxu0 0.0
  %131 = vmatpush1.msra.mxu0 0.0
  %132 = vmatprep.subr.mxu0 0.0
  %133 = vmatpush1.msra.mxu0 0.0
  %134 = vmatprep.subr.mxu0 0.0
  %135 = vmatpush1.msra.mxu0 0.0
  %136 = vmatprep.subr.mxu0 0.0
  %137 = vmatpush1.msra.mxu0 0.0
  %138 = vmatprep.subr.mxu0 0.0
  %139 = vmatpush1.msra.mxu0 0.0
  %140 = vmatprep.subr.mxu0 0.0
  %141 = vmatpush1.msra.mxu0 0.0
  %142 = vmatprep.subr.mxu0 0.0
  %143 = vmatpush1.msra.mxu0 0.0
  %144 = vmatprep.subr.mxu0 0.0
  %145 = vmatpush1.msra.mxu0 0.0
  %146 = vmatprep.subr.mxu0 0.0
  %147 = vmatpush1.msra.mxu0 0.0
  %148 = vmatprep.subr.mxu0 0.0
  %149 = vmatpush1.msra.mxu0 0.0
  %150 = vmatprep.subr.mxu0 0.0
  %151 = vmatpush1.msra.mxu0 0.0
  %152 = vmatprep.subr.mxu0 0.0
  %153 = vmatpush1.msra.mxu0 0.0
  %154 = vmatprep.subr.mxu0 0.0
  %155 = vmatpush1.msra.mxu0 %v112
  %156 = vmatprep.subr.mxu0 0.0
  %157 = vmatpush2.msra.mxu0 0.0
  %158 = vmatprep.subr.mxu0 0.0
  %159 = vmatpush2.msra.mxu0 0.0
  %160 = vmatprep.subr.mxu0 0.0
  %161 = vmatpush2.msra.mxu0 0.0
  %162 = vmatprep.subr.mxu0 0.0
  %163 = vmatpush2.msra.mxu0 0.0
  %164 = vmatprep.subr.mxu0 0.0
  %165 = vmatpush2.msra.mxu0 0.0
  %166 = vmatprep.subr.mxu0 0.0
  %167 = vmatpush2.msra.mxu0 0.0
  %168 = vmatprep.subr.mxu0 0.0
  %169 = vmatpush2.msra.mxu0 0.0
  %170 = vmatprep.subr.mxu0 0.0
  %171 = vmatpush2.msra.mxu0 0.0
  %172 = vmatprep.subr.mxu0 0.0
  %173 = vmatpush2.msra.mxu0 0.0
  %174 = vmatprep.subr.mxu0 0.0
  %175 = vmatpush2.msra.mxu0 0.0
  %176 = vmatprep.subr.mxu0 0.0
  %177 = vmatpush2.msra.mxu0 0.0
  %178 = vmatprep.subr.mxu0 0.0
  %179 = vmatpush2.msra.mxu0 0.0
  %180 = vmatprep.subr.mxu0 0.0
  %181 = vmatpush2.msra.mxu0 0.0
  %182 = vmatprep.subr.mxu0 0.0
  %183 = vmatpush2.msra.mxu0 0.0
  %184 = vmatprep.subr.mxu0 0.0
  %185 = vmatpush2.msra.mxu0 0.0
  %186 = vmatprep.subr.mxu0 0.0
  %187 = vmatpush2.msra.mxu0 0.0
  %188 = vmatprep.mubr.f32.mxu0 0.0
  %189 = vmatmul.mubr.f32.gmra.mxu0 %v122
  %v190 = vpop.f32.mrf.mxu0
  %v191 = vadd.f32 %v118, %v190
  %v192 = vpop.f32.mrf.mxu0
  %193 = vdwg.mxu0
  %v194 = vmax.f32 %v191, 0.0
  %v195 = vld [vmem:[%s5] sm:$0xf]
  %v196 = vld [vmem:[%s6] sm:$0xf]
  %198 = vset.pattern.permute.xlu0 0
  %199 = vperm.xlu0 %198, %v196
  %v200 = vpop.permute.xlu0 %199
  %v203 = vsel %vm120, %v195, 0
  %205 = vmatprep.subr.mxu0 0.0
  %206 = vmatpush1.msra.mxu0 0.0
  %207 = vmatprep.subr.mxu0 0.0
  %208 = vmatpush1.msra.mxu0 0.0
  %209 = vmatprep.subr.mxu0 0.0
  %210 = vmatpush1.msra.mxu0 0.0
  %211 = vmatprep.subr.mxu0 0.0
  %212 = vmatpush1.msra.mxu0 0.0
  %213 = vmatprep.subr.mxu0 0.0
  %214 = vmatpush1.msra.mxu0 0.0
  %215 = vmatprep.subr.mxu0 0.0
  %216 = vmatpush1.msra.mxu0 0.0
  %217 = vmatprep.subr.mxu0 0.0
  %218 = vmatpush1.msra.mxu0 0.0
  %219 = vmatprep.subr.mxu0 0.0
  %220 = vmatpush1.msra.mxu0 0.0
  %221 = vmatprep.subr.mxu0 0.0
  %222 = vmatpush1.msra.mxu0 0.0
  %223 = vmatprep.subr.mxu0 0.0
  %224 = vmatpush1.msra.mxu0 0.0
  %225 = vmatprep.subr.mxu0 0.0
  %226 = vmatpush1.msra.mxu0 0.0
  %227 = vmatprep.subr.mxu0 0.0
  %228 = vmatpush1.msra.mxu0 0.0
  %229 = vmatprep.subr.mxu0 0.0
  %230 = vmatpush1.msra.mxu0 0.0
  %231 = vmatprep.subr.mxu0 0.0
  %232 = vmatpush1.msra.mxu0 0.0
  %233 = vmatprep.subr.mxu0 0.0
  %234 = vmatpush1.msra.mxu0 0.0
  %235 = vmatprep.subr.mxu0 0.0
  %236 = vmatpush1.msra.mxu0 %v194
  %237 = vmatprep.subr.mxu0 0.0
  %238 = vmatpush2.msra.mxu0 0.0
  %239 = vmatprep.subr.mxu0 0.0
  %240 = vmatpush2.msra.mxu0 0.0
  %241 = vmatprep.subr.mxu0 0.0
  %242 = vmatpush2.msra.mxu0 0.0
  %243 = vmatprep.subr.mxu0 0.0
  %244 = vmatpush2.msra.mxu0 0.0
  %245 = vmatprep.subr.mxu0 0.0
  %246 = vmatpush2.msra.mxu0 0.0
  %247 = vmatprep.subr.mxu0 0.0
  %248 = vmatpush2.msra.mxu0 0.0
  %249 = vmatprep.subr.mxu0 0.0
  %250 = vmatpush2.msra.mxu0 0.0
  %251 = vmatprep.subr.mxu0 0.0
  %252 = vmatpush2.msra.mxu0 0.0
  %253 = vmatprep.subr.mxu0 0.0
  %254 = vmatpush2.msra.mxu0 0.0
  %255 = vmatprep.subr.mxu0 0.0
  %256 = vmatpush2.msra.mxu0 0.0
  %257 = vmatprep.subr.mxu0 0.0
  %258 = vmatpush2.msra.mxu0 0.0
  %259 = vmatprep.subr.mxu0 0.0
  %260 = vmatpush2.msra.mxu0 0.0
  %261 = vmatprep.subr.mxu0 0.0
  %262 = vmatpush2.msra.mxu0 0.0
  %263 = vmatprep.subr.mxu0 0.0
  %264 = vmatpush2.msra.mxu0 0.0
  %265 = vmatprep.subr.mxu0 0.0
  %266 = vmatpush2.msra.mxu0 0.0
  %267 = vmatprep.subr.mxu0 0.0
  %268 = vmatpush2.msra.mxu0 0.0
  %269 = vmatprep.mubr.f32.mxu0 0.0
  %270 = vmatmul.mubr.f32.gmra.mxu0 %v203
  %v271 = vpop.f32.mrf.mxu0
  %v272 = vadd.f32 %v200, %v271
  %v273 = vpop.f32.mrf.mxu0
  %274 = vdwg.mxu0
  %v275 = vtanh.pop %v272
  %276 = vst [vmem:[%s7] sm:$0xf] %v275
  // Predicated region
  $region30: #{ddqn_forward.1} parent=0 // pred_check
    _
  $region31: #{ddqn_forward.1} parent=0 // pred_check_branch
    %278 = sbr.rel (0) target = $region33
  $region32: #{ddqn_forward.1} parent=0 // pred_region
    _
  $region33: #{ddqn_forward.1} parent=0 // pred_fallthru
    _
  // Predicated region
  $region34: #{ddqn_forward.1} parent=0 // pred_check
    _
  $region35: #{ddqn_forward.1} parent=0 // pred_check_branch
    %280 = sbr.rel (0) target = $region37
  $region36: #{ddqn_forward.1} parent=0 // pred_region
    _
  $region37: #{ddqn_forward.1} parent=0 // pred_fallthru
    _

</llo_original>
